<compile_context>
chip_gen: v7x
topology: tpu7x:2x2x1
jax: 0.10.0
libtpu: 0.0.40
codegen_flags: <defaults>
</compile_context>

<pallas_src>
import functools

import numpy as np
import jax
import jax.numpy as jnp
from jax.experimental import pallas as pl
from jax.experimental.pallas import tpu as pltpu

LAYER_DIMS = [(8, 16), (16, 32), (32, 64), (64, 32), (32, 16), (16, 1)]  # (in, out)
LANE = 128
BIAS_COL = LANE - 1                                   # bias stored in the last lane
N_ROWS = sum(o for _, o in LAYER_DIMS)                # 161 parameter rows
R_PAD = ((N_ROWS + 7) // 8) * 8                       # 168, sublane-aligned
FLOPS_PER_COL = 2 * sum(i * o for i, o in LAYER_DIMS)
DEFAULT_TB = 2048                                     # lanes per batch tile (sweep 2048-8192)


def mlp_kernel(params_ref, x_ref, out_ref):
    """One batch tile, batch on lanes.

    params_ref: (R_PAD, 128) bf16 packed slab (weights in cols [0, fin), bias in lane 127)
    x_ref:      (8, TB)  bf16 input features (batch on lanes)
    out_ref:    (1, TB)  f32 lane-dense sigmoid output
    """
    h = x_ref[...]                                                     # bf16 (8, TB)
    off = 0
    last = len(LAYER_DIMS) - 1
    for li, (fin, fout) in enumerate(LAYER_DIMS):
        w = params_ref[off:off + fout, 0:fin]                          # bf16 (fout, fin), static slice
        b = params_ref[off:off + fout, BIAS_COL:BIAS_COL + 1].astype(jnp.float32)
        # bf16 x bf16 MXU matmul with f32 accumulation; bias-add in f32.
        z = jnp.dot(w, h, preferred_element_type=jnp.float32) + b      # f32 (fout, TB)
        if li == last:
            out_ref[...] = jax.nn.sigmoid(z).astype(out_ref.dtype)
        else:
            h = jnp.maximum(z, 0.0).astype(jnp.bfloat16)               # ReLU in f32, bf16 for next MXU pass
        off += fout


def pack_params(weights, biases):
    """Pack all layer weights/biases into ONE (R_PAD, 128) bf16 slab.

    Host-side numpy: call once, reuse the returned device array for every forward.
    """
    buf = np.zeros((R_PAD, LANE), np.float32)
    off = 0
    for (fin, fout), w, b in zip(LAYER_DIMS, weights, biases):
        w = np.asarray(w, np.float32)
        b = np.asarray(b, np.float32)
        assert w.shape == (fout, fin) and b.shape == (fout,)
        buf[off:off + fout, 0:fin] = w
        buf[off:off + fout, BIAS_COL] = b
        off += fout
    return jnp.asarray(buf, dtype=jnp.bfloat16)


def _choose_tile(B, tb):
    """Pick the batch tile width (lanes) and padded batch size."""
    bp_min = ((B + LANE - 1) // LANE) * LANE          # batch rounded up to full lane chunks
    TB = min(tb, bp_min)
    # v7x megacore: if the batch spans >=2 lane chunks, keep >=2 grid steps so the
    # "parallel" batch axis can be sharded across both TensorCores.
    if bp_min >= 2 * LANE:
        TB = min(TB, max(LANE, ((bp_min // 2) // LANE) * LANE))
    Bp = ((B + TB - 1) // TB) * TB
    return TB, Bp


def _pallas_mlp(xT, params, TB, Bp):
    grid = (Bp // TB,)
    # Static VMEM budget check: params(x2 bufs, bf16) + x tiles(x2, bf16) +
    # out tiles(x2, f32) + f32 layer intermediates (upper bound).
    vmem_bytes = (2 * R_PAD * LANE * 2 + 2 * 8 * TB * 2 + 2 * 1 * TB * 4
                  + N_ROWS * TB * 4)
    assert vmem_bytes < 24 * 1024 * 1024, (
        f"batch tile TB={TB} would need ~{vmem_bytes} B VMEM; shrink TB or raise vmem_limit_bytes")
    return pl.pallas_call(
        mlp_kernel,
        out_shape=jax.ShapeDtypeStruct((1, Bp), jnp.float32),
        grid_spec=pltpu.PrefetchScalarGridSpec(
            num_scalar_prefetch=0,
            grid=grid,
            in_specs=[
                pl.BlockSpec((R_PAD, LANE), lambda i: (0, 0)),   # params: same block every step -> one DMA
                pl.BlockSpec((8, TB), lambda i: (0, i)),         # x tile, batch on lanes
            ],
            out_specs=pl.BlockSpec((1, TB), lambda i: (0, i)),   # lane-dense output tile
        ),
        compiler_params=pltpu.CompilerParams(
            dimension_semantics=("parallel",)),                  # megacore-split batch tiles
        cost_estimate=pl.CostEstimate(
            flops=FLOPS_PER_COL * Bp,
            transcendentals=Bp,
            bytes_accessed=8 * Bp * 2 + Bp * 4 + R_PAD * LANE * 2),
    )(params, xT)


@functools.partial(jax.jit, static_argnames=("tb",))
def mlp_forward(x, params, *, tb=DEFAULT_TB):
    """x: (B, 8) features (torch layout). params: packed slab from pack_params().

    The transpose/pad relayout fuses with the pallas_call inside this single jit.
    """
    B, fin = x.shape
    assert fin == LAYER_DIMS[0][0]
    TB, Bp = _choose_tile(B, tb)
    xT = jnp.transpose(x).astype(jnp.bfloat16)         # (8, B), batch on lanes, bf16 MXU operand
    if Bp != B:
        xT = jnp.pad(xT, ((0, 0), (0, Bp - B)))        # zero-pad ragged last tile
    yT = _pallas_mlp(xT, params, TB, Bp)
    return yT[0, :B].reshape(B, 1)


@functools.partial(jax.jit, static_argnames=("tb",))
def mlp_forward_lanes(xT, params, *, tb=DEFAULT_TB):
    """Zero-relayout path: xT is already (8, B) batch-on-lanes (preferred for producers)."""
    fin, B = xT.shape
    assert fin == LAYER_DIMS[0][0]
    TB, Bp = _choose_tile(B, tb)
    xT = xT.astype(jnp.bfloat16)
    if Bp != B:
        xT = jnp.pad(xT, ((0, 0), (0, Bp - B)))
    yT = _pallas_mlp(xT, params, TB, Bp)
    return yT[0, :B].reshape(B, 1)


def reference_forward(x, weights, biases):
    h = x
    for li, (w, b) in enumerate(zip(weights, biases)):
        z = h @ w.T + b
        h = jax.nn.sigmoid(z) if li == len(weights) - 1 else jnp.maximum(z, 0.0)
    return h


if __name__ == "__main__":
    key = jax.random.PRNGKey(0)
    B = 8
    keys = jax.random.split(key, 1 + 2 * len(LAYER_DIMS))
    x = jax.random.normal(keys[0], (B, 8), dtype=jnp.float32)

    # Deterministic torch-nn.Linear-style init: U(-1/sqrt(fan_in), 1/sqrt(fan_in)).
    weights, biases = [], []
    for li, (fin, fout) in enumerate(LAYER_DIMS):
        bound = 1.0 / (fin ** 0.5)
        weights.append(jax.random.uniform(keys[1 + 2 * li], (fout, fin),
                                          dtype=jnp.float32, minval=-bound, maxval=bound))
        biases.append(jax.random.uniform(keys[2 + 2 * li], (fout,),
                                         dtype=jnp.float32, minval=-bound, maxval=bound))

    params = pack_params(weights, biases)      # packed ONCE (host-side), reused every forward

    y = mlp_forward(x, params)
    jax.block_until_ready(y)

    y_ref = reference_forward(x, weights, biases)
    assert y.shape == (B, 1)
    err = float(jnp.max(jnp.abs(y - y_ref)))
    # bf16 MXU operands -> tolerance loosened from 1e-5 to ~1e-2 (per perf review).
    assert err < 2e-2, f"max abs err {err}"

    # Zero-relayout (batch-on-lanes) entry point agrees with the standard path.
    y2 = mlp_forward_lanes(jnp.transpose(x), params)
    jax.block_until_ready(y2)
    assert float(jnp.max(jnp.abs(y2 - y))) < 1e-6

    print("KERNEL_OK")
</pallas_src>

<mosaic_0001>
module attributes {stable_mosaic.version = 11 : i64} {
  func.func @mlp_kernel(%arg0: i32, %arg1: memref<168x128xbf16, #tpu.memory_space<vmem>>, %arg2: memref<8x128xbf16, #tpu.memory_space<vmem>>, %arg3: memref<1x128xf32, #tpu.memory_space<vmem>>) attributes {dimension_semantics = [#tpu.dimension_semantics<parallel>], iteration_bounds = array<i64: 1>, scalar_prefetch = 0 : i64, scratch_operands = 0 : i64, tpu.core_type = #tpu.core_type<tc>, window_params = [{pipeline_mode = #tpu.pipeline_mode<synchronous>, transform_indices = @transform_0, window_bounds = array<i64: 168, 128>}, {transform_indices = @transform_1, window_bounds = array<i64: 8, 128>}, {transform_indices = @transform_2, window_bounds = array<i64: 1, 128>}]} {
    %c0 = arith.constant 0 : index
    %c0_0 = arith.constant 0 : index
    %0 = vector.load %arg2[%c0, %c0_0] : memref<8x128xbf16, #tpu.memory_space<vmem>>, vector<8x128xbf16>
    %c0_1 = arith.constant 0 : index
    %c0_2 = arith.constant 0 : index
    %1 = vector.load %arg1[%c0_1, %c0_2] : memref<168x128xbf16, #tpu.memory_space<vmem>>, vector<16x8xbf16>
    %c0_3 = arith.constant 0 : index
    %c127 = arith.constant 127 : index
    %2 = vector.load %arg1[%c0_3, %c127] : memref<168x128xbf16, #tpu.memory_space<vmem>>, vector<16x1xbf16>
    %3 = arith.extf %2 : vector<16x1xbf16> to vector<16x1xf32>
    %cst = arith.constant dense<0.000000e+00> : vector<16x128xf32>
    %4 = tpu.matmul %1, %0, %cst {dimension_numbers = #tpu.dot_dimension_numbers<[1], [0], [0], [1], [0, 0, 1, 1], [], []>} : vector<16x8xbf16>, vector<8x128xbf16>, vector<16x128xf32> -> vector<16x128xf32>
    %5 = vector.broadcast %3 : vector<16x1xf32> to vector<16x128xf32>
    %6 = arith.addf %4, %5 : vector<16x128xf32>
    %cst_4 = arith.constant 0.000000e+00 : f32
    %7 = vector.broadcast %cst_4 : f32 to vector<16x128xf32>
    %8 = arith.maximumf %6, %7 : vector<16x128xf32>
    %9 = arith.truncf %8 : vector<16x128xf32> to vector<16x128xbf16>
    %c16 = arith.constant 16 : index
    %c0_5 = arith.constant 0 : index
    %10 = vector.load %arg1[%c16, %c0_5] : memref<168x128xbf16, #tpu.memory_space<vmem>>, vector<32x16xbf16>
    %c16_6 = arith.constant 16 : index
    %c127_7 = arith.constant 127 : index
    %11 = vector.load %arg1[%c16_6, %c127_7] : memref<168x128xbf16, #tpu.memory_space<vmem>>, vector<32x1xbf16>
    %12 = arith.extf %11 : vector<32x1xbf16> to vector<32x1xf32>
    %cst_8 = arith.constant dense<0.000000e+00> : vector<32x128xf32>
    %13 = tpu.matmul %10, %9, %cst_8 {dimension_numbers = #tpu.dot_dimension_numbers<[1], [0], [0], [1], [0, 0, 1, 1], [], []>} : vector<32x16xbf16>, vector<16x128xbf16>, vector<32x128xf32> -> vector<32x128xf32>
    %14 = vector.broadcast %12 : vector<32x1xf32> to vector<32x128xf32>
    %15 = arith.addf %13, %14 : vector<32x128xf32>
    %cst_9 = arith.constant 0.000000e+00 : f32
    %16 = vector.broadcast %cst_9 : f32 to vector<32x128xf32>
    %17 = arith.maximumf %15, %16 : vector<32x128xf32>
    %18 = arith.truncf %17 : vector<32x128xf32> to vector<32x128xbf16>
    %c48 = arith.constant 48 : index
    %c0_10 = arith.constant 0 : index
    %19 = vector.load %arg1[%c48, %c0_10] : memref<168x128xbf16, #tpu.memory_space<vmem>>, vector<64x32xbf16>
    %c48_11 = arith.constant 48 : index
    %c127_12 = arith.constant 127 : index
    %20 = vector.load %arg1[%c48_11, %c127_12] : memref<168x128xbf16, #tpu.memory_space<vmem>>, vector<64x1xbf16>
    %21 = arith.extf %20 : vector<64x1xbf16> to vector<64x1xf32>
    %cst_13 = arith.constant dense<0.000000e+00> : vector<64x128xf32>
    %22 = tpu.matmul %19, %18, %cst_13 {dimension_numbers = #tpu.dot_dimension_numbers<[1], [0], [0], [1], [0, 0, 1, 1], [], []>} : vector<64x32xbf16>, vector<32x128xbf16>, vector<64x128xf32> -> vector<64x128xf32>
    %23 = vector.broadcast %21 : vector<64x1xf32> to vector<64x128xf32>
    %24 = arith.addf %22, %23 : vector<64x128xf32>
    %cst_14 = arith.constant 0.000000e+00 : f32
    %25 = vector.broadcast %cst_14 : f32 to vector<64x128xf32>
    %26 = arith.maximumf %24, %25 : vector<64x128xf32>
    %27 = arith.truncf %26 : vector<64x128xf32> to vector<64x128xbf16>
    %c112 = arith.constant 112 : index
    %c0_15 = arith.constant 0 : index
    %28 = vector.load %arg1[%c112, %c0_15] : memref<168x128xbf16, #tpu.memory_space<vmem>>, vector<32x64xbf16>
    %c112_16 = arith.constant 112 : index
    %c127_17 = arith.constant 127 : index
    %29 = vector.load %arg1[%c112_16, %c127_17] : memref<168x128xbf16, #tpu.memory_space<vmem>>, vector<32x1xbf16>
    %30 = arith.extf %29 : vector<32x1xbf16> to vector<32x1xf32>
    %cst_18 = arith.constant dense<0.000000e+00> : vector<32x128xf32>
    %31 = tpu.matmul %28, %27, %cst_18 {dimension_numbers = #tpu.dot_dimension_numbers<[1], [0], [0], [1], [0, 0, 1, 1], [], []>} : vector<32x64xbf16>, vector<64x128xbf16>, vector<32x128xf32> -> vector<32x128xf32>
    %32 = vector.broadcast %30 : vector<32x1xf32> to vector<32x128xf32>
    %33 = arith.addf %31, %32 : vector<32x128xf32>
    %cst_19 = arith.constant 0.000000e+00 : f32
    %34 = vector.broadcast %cst_19 : f32 to vector<32x128xf32>
    %35 = arith.maximumf %33, %34 : vector<32x128xf32>
    %36 = arith.truncf %35 : vector<32x128xf32> to vector<32x128xbf16>
    %c144 = arith.constant 144 : index
    %c0_20 = arith.constant 0 : index
    %37 = vector.load %arg1[%c144, %c0_20] : memref<168x128xbf16, #tpu.memory_space<vmem>>, vector<16x32xbf16>
    %c144_21 = arith.constant 144 : index
    %c127_22 = arith.constant 127 : index
    %38 = vector.load %arg1[%c144_21, %c127_22] : memref<168x128xbf16, #tpu.memory_space<vmem>>, vector<16x1xbf16>
    %39 = arith.extf %38 : vector<16x1xbf16> to vector<16x1xf32>
    %cst_23 = arith.constant dense<0.000000e+00> : vector<16x128xf32>
    %40 = tpu.matmul %37, %36, %cst_23 {dimension_numbers = #tpu.dot_dimension_numbers<[1], [0], [0], [1], [0, 0, 1, 1], [], []>} : vector<16x32xbf16>, vector<32x128xbf16>, vector<16x128xf32> -> vector<16x128xf32>
    %41 = vector.broadcast %39 : vector<16x1xf32> to vector<16x128xf32>
    %42 = arith.addf %40, %41 : vector<16x128xf32>
    %cst_24 = arith.constant 0.000000e+00 : f32
    %43 = vector.broadcast %cst_24 : f32 to vector<16x128xf32>
    %44 = arith.maximumf %42, %43 : vector<16x128xf32>
    %45 = arith.truncf %44 : vector<16x128xf32> to vector<16x128xbf16>
    %c160 = arith.constant 160 : index
    %c0_25 = arith.constant 0 : index
    %46 = vector.load %arg1[%c160, %c0_25] : memref<168x128xbf16, #tpu.memory_space<vmem>>, vector<1x16xbf16>
    %c160_26 = arith.constant 160 : index
    %c127_27 = arith.constant 127 : index
    %47 = vector.load %arg1[%c160_26, %c127_27] : memref<168x128xbf16, #tpu.memory_space<vmem>>, vector<1x1xbf16>
    %48 = arith.extf %47 : vector<1x1xbf16> to vector<1x1xf32>
    %cst_28 = arith.constant dense<0.000000e+00> : vector<1x128xf32>
    %49 = tpu.matmul %46, %45, %cst_28 {dimension_numbers = #tpu.dot_dimension_numbers<[1], [0], [0], [1], [0, 0, 1, 1], [], []>} : vector<1x16xbf16>, vector<16x128xbf16>, vector<1x128xf32> -> vector<1x128xf32>
    %50 = vector.broadcast %48 : vector<1x1xf32> to vector<1x128xf32>
    %51 = arith.addf %49, %50 : vector<1x128xf32>
    %52 = arith.negf %51 : vector<1x128xf32>
    %53 = math.exp %52 : vector<1x128xf32>
    %cst_29 = arith.constant 1.000000e+00 : f32
    %54 = vector.broadcast %cst_29 : f32 to vector<1x128xf32>
    %55 = arith.addf %54, %53 : vector<1x128xf32>
    %56 = arith.divf %54, %55 : vector<1x128xf32>
    %c0_30 = arith.constant 0 : index
    %c0_31 = arith.constant 0 : index
    %57 = vector.load %arg3[%c0_30, %c0_31] : memref<1x128xf32, #tpu.memory_space<vmem>>, vector<1x128xf32>
    tpu.vector_store %arg3[%c0_30, %c0_31], %56 {strides = array<i32>} : memref<1x128xf32, #tpu.memory_space<vmem>>, vector<1x128xf32>,
    return
  }
  func.func @transform_0(%arg0: i32) -> (i32, i32) {
    %c0_i32 = arith.constant 0 : i32
    %c0_i32_0 = arith.constant 0 : i32
    %c0_i32_1 = arith.constant 0 : i32
    return %c0_i32, %c0_i32_0 : i32, i32
  }
  func.func @transform_1(%arg0: i32) -> (i32, i32) {
    %c0_i32 = arith.constant 0 : i32
    %c0_i32_0 = arith.constant 0 : i32
    return %c0_i32, %arg0 : i32, i32
  }
  func.func @transform_2(%arg0: i32) -> (i32, i32) {
    %c0_i32 = arith.constant 0 : i32
    %c0_i32_0 = arith.constant 0 : i32
    return %c0_i32, %arg0 : i32, i32
  }
}

</mosaic_0001>

<llo_original>
// kernel: mlp_forward.1
$region0: #{mlp_forward.1}
  #allocation0 [shape = 'u32[]', space=smem, size = 0x4, offset = 0x4, fixed_abs, tag = 'smem constant byte address 0x4 - core index']
  #allocation1 [shape = 'u32[144,128]{1,0:T(1,128)}', space=vmem, size = 0x12000, scoped, tag = 'internal scratch']
  %s0 = inlined_call_operand.hbm [shape: bf16[168,128], index: 0, kind: input, shape index: {}]
  %s1 = inlined_call_operand.vmem [shape: bf16[8,128], index: 1, kind: input, shape index: {}]
  %s2 = inlined_call_operand.vmem [shape: f32[1,128], index: 2, kind: output, shape index: {}]
  %s3 = sld [smem:[#allocation0]]
  $region22: #{mlp_forward.1} parent=0
    _
  %s5 = ssub.s32 1, %s3
  %s6 = scalar_select 0, %s5, %s3
  $region1: #{mlp_forward.1} parent=0
    #allocation2 [shape = 'u8[43008]{0}', space=vmem, size = 0xa800, scoped, tag = 'input window, operand 0, single buffered']
    #allocation3 [shape = 's32[1]{0}', space=sflag, size = 0x4, scoped, tag = 'scoped memory for mlp_forward.1']
    %7 = vsyncpa [#allocation3], 0
    // Predicated region
    $region2: #{mlp_forward.1} parent=1 // pred_check
      _
    $region3: #{mlp_forward.1} parent=1 // pred_check_branch
      %9 = sbr.rel (0) target = $region5
    $region4: #{mlp_forward.1} parent=1 // pred_region
      %s11 = ssub.s32 1344, 1344
      %12 = vsyncadd [#allocation3], %s11
      %s13 = sshll.u32 [#allocation2], 4
      %s14 = int_to_ptr.vmem [resolvable:$true] %s13
      %19 = dma.hbm_to_vmem [thread:$0]  %s0, 1344, %s14, [#allocation3], 64, 64, 4
    $region5: #{mlp_forward.1} parent=1 // pred_fallthru
      _
    // Predicated region
    $region6: #{mlp_forward.1} parent=1 // pred_check
      _
    $region7: #{mlp_forward.1} parent=1 // pred_check_branch
      %21 = sbr.rel (0) target = $region9
    $region8: #{mlp_forward.1} parent=1 // pred_region
      _
    $region9: #{mlp_forward.1} parent=1 // pred_fallthru
      _
    // Predicated region
    $region10: #{mlp_forward.1} parent=1 // pred_check
      _
    $region11: #{mlp_forward.1} parent=1 // pred_check_branch
      %23 = sbr.rel (0) target = $region13
    $region12: #{mlp_forward.1} parent=1 // pred_region
      %24 = dma.done [#allocation3], 1344
    $region13: #{mlp_forward.1} parent=1 // pred_fallthru
      _
    %v26 = vld [vmem:[%s1] sm:$0xf]
    %v27 = vld [vmem:[#allocation2] sm:$0xf]
    %v28 = vld [vmem:[#allocation2 + $0x4] sm:$0xf]
    %v29 = vunpack.c.l.bf16 %v27
    %v30 = vunpack.c.l.bf16 %v28
    %32 = vset.pattern.permute.xlu0 127
    %33 = vperm.xlu0 %32, %v29
    %v34 = vpop.permute.xlu0 %33
    %37 = vset.pattern.permute.xlu0 127
    %38 = vperm.xlu0 %37, %v30
    %v39 = vpop.permute.xlu0 %38
    %v43 = vunpack.c.l.b16 %v27
    %v44 = vunpack.c.l.b16 %v28
    %v45 = vpack.c.b16 %v44, %v43
    %vm46 = vcmask 64512
    %v48 = vsel %vm46, %v45, 0
    %vm50 = vcmask 1043456
    %v52 = vsel %vm50, %v26, 0
    %54 = vmatprep.subr.bf16.mxu0 0
    %55 = vmatpush1.bf16.msra.mxu0 %v52
    %56 = vmatprep.subr.bf16.mxu0 0
    %57 = vmatpush1.bf16.msra.mxu0 0
    %58 = vmatprep.subr.bf16.mxu0 0
    %59 = vmatpush1.bf16.msra.mxu0 0
    %60 = vmatprep.subr.bf16.mxu0 0
    %61 = vmatpush1.bf16.msra.mxu0 0
    %62 = vmatprep.subr.bf16.mxu0 0
    %63 = vmatpush1.bf16.msra.mxu0 0
    %64 = vmatprep.subr.bf16.mxu0 0
    %65 = vmatpush1.bf16.msra.mxu0 0
    %66 = vmatprep.subr.bf16.mxu0 0
    %67 = vmatpush1.bf16.msra.mxu0 0
    %68 = vmatprep.subr.bf16.mxu0 0
    %69 = vmatpush1.bf16.msra.mxu0 0
    %70 = vmatprep.subr.bf16.mxu0 0
    %71 = vmatpush1.bf16.msra.mxu0 0
    %72 = vmatprep.subr.bf16.mxu0 0
    %73 = vmatpush1.bf16.msra.mxu0 0
    %74 = vmatprep.subr.bf16.mxu0 0
    %75 = vmatpush1.bf16.msra.mxu0 0
    %76 = vmatprep.subr.bf16.mxu0 0
    %77 = vmatpush1.bf16.msra.mxu0 0
    %78 = vmatprep.subr.bf16.mxu0 0
    %79 = vmatpush1.bf16.msra.mxu0 0
    %80 = vmatprep.subr.bf16.mxu0 0
    %81 = vmatpush1.bf16.msra.mxu0 0
    %82 = vmatprep.subr.bf16.mxu0 0
    %83 = vmatpush1.bf16.msra.mxu0 0
    %84 = vmatprep.subr.bf16.mxu0 0
    %85 = vmatpush1.bf16.msra.mxu0 0
    %86 = vmatprep.mubr.bf16.mxu0 0
    %87 = vmatmul.mubr.bf16.gmra.mrb[0].mxu0 %v48
    %v88 = vpop.f32.mrb[0].mxu0
    %v89 = vadd.f32 %v34, %v88
    %v90 = vpop.f32.mrb[0].mxu0
    %v91 = vpop.f32.mrb[0].mxu0
    %v92 = vadd.f32 %v39, %v91
    %v93 = vpop.f32.mrb[0].mxu0
    %94 = vdwg.mxu0
    %v95 = vmax.f32 %v89, 0.0
    %v96 = vmax.f32 %v92, 0.0
    %v97 = vpack.c.bf16 %v96, %v95
    %v98 = vld [vmem:[#allocation2 + $0x8] sm:$0xf]
    %v99 = vld [vmem:[#allocation2 + $0xc] sm:$0xf]
    %v100 = vld [vmem:[#allocation2 + $0x10] sm:$0xf]
    %v101 = vld [vmem:[#allocation2 + $0x14] sm:$0xf]
    %v102 = vunpack.c.l.bf16 %v98
    %v103 = vunpack.c.l.bf16 %v99
    %v104 = vunpack.c.l.bf16 %v100
    %v105 = vunpack.c.l.bf16 %v101
    %107 = vset.pattern.permute.xlu0 127
    %108 = vperm.xlu0 %107, %v102
    %v109 = vpop.permute.xlu0 %108
    %112 = vset.pattern.permute.xlu0 127
    %113 = vperm.xlu0 %112, %v103
    %v114 = vpop.permute.xlu0 %113
    %117 = vset.pattern.permute.xlu0 127
    %118 = vperm.xlu0 %117, %v104
    %v119 = vpop.permute.xlu0 %118
    %122 = vset.pattern.permute.xlu0 127
    %123 = vperm.xlu0 %122, %v105
    %v124 = vpop.permute.xlu0 %123
    %v130 = vunpack.c.l.b16 %v98
    %v131 = vunpack.c.l.b16 %v99
    %v132 = vunpack.c.l.b16 %v100
    %v133 = vunpack.c.l.b16 %v101
    %v134 = vpack.c.b16 %v131, %v130
    %v135 = vpack.c.b16 %v133, %v132
    %vm136 = vcmask 130048
    %v138 = vsel %vm136, %v134, 0
    %v141 = vsel %vm136, %v135, 0
    %143 = vmatprep.subr.bf16.mxu0 0
    %144 = vmatpush1.bf16.msra.mxu0 %v97
    %145 = vmatprep.subr.bf16.mxu0 0
    %146 = vmatpush1.bf16.msra.mxu0 0
    %147 = vmatprep.subr.bf16.mxu0 0
    %148 = vmatpush1.bf16.msra.mxu0 0
    %149 = vmatprep.subr.bf16.mxu0 0
    %150 = vmatpush1.bf16.msra.mxu0 0
    %151 = vmatprep.subr.bf16.mxu0 0
    %152 = vmatpush1.bf16.msra.mxu0 0
    %153 = vmatprep.subr.bf16.mxu0 0
    %154 = vmatpush1.bf16.msra.mxu0 0
    %155 = vmatprep.subr.bf16.mxu0 0
    %156 = vmatpush1.bf16.msra.mxu0 0
    %157 = vmatprep.subr.bf16.mxu0 0
    %158 = vmatpush1.bf16.msra.mxu0 0
    %159 = vmatprep.subr.bf16.mxu0 0
    %160 = vmatpush1.bf16.msra.mxu0 0
    %161 = vmatprep.subr.bf16.mxu0 0
    %162 = vmatpush1.bf16.msra.mxu0 0
    %163 = vmatprep.subr.bf16.mxu0 0
    %164 = vmatpush1.bf16.msra.mxu0 0
    %165 = vmatprep.subr.bf16.mxu0 0
    %166 = vmatpush1.bf16.msra.mxu0 0
    %167 = vmatprep.subr.bf16.mxu0 0
    %168 = vmatpush1.bf16.msra.mxu0 0
    %169 = vmatprep.subr.bf16.mxu0 0
    %170 = vmatpush1.bf16.msra.mxu0 0
    %171 = vmatprep.subr.bf16.mxu0 0
    %172 = vmatpush1.bf16.msra.mxu0 0
    %173 = vmatprep.subr.bf16.mxu0 0
    %174 = vmatpush1.bf16.msra.mxu0 0
    %175 = vmatprep.mubr.bf16.mxu0 0
    %176 = vmatmul.mubr.bf16.gmra.mrb[0].mxu0 %v138
    %v177 = vpop.f32.mrb[0].mxu0
    %v178 = vadd.f32 %v109, %v177
    %v179 = vpop.f32.mrb[0].mxu0
    %v180 = vpop.f32.mrb[0].mxu0
    %v181 = vadd.f32 %v114, %v180
    %v182 = vpop.f32.mrb[0].mxu0
    %183 = vmatprep.mubr.bf16.mxu0 0
    %184 = vmatmul.mubr.bf16.gmra.mrb[0].mxu0 %v141
    %v185 = vpop.f32.mrb[0].mxu0
    %v186 = vadd.f32 %v119, %v185
    %v187 = vpop.f32.mrb[0].mxu0
    %v188 = vpop.f32.mrb[0].mxu0
    %v189 = vadd.f32 %v124, %v188
    %v190 = vpop.f32.mrb[0].mxu0
    %191 = vdwg.mxu0
    %v192 = vmax.f32 %v178, 0.0
    %v193 = vmax.f32 %v181, 0.0
    %v194 = vmax.f32 %v186, 0.0
    %v195 = vmax.f32 %v189, 0.0
    %v196 = vpack.c.bf16 %v193, %v192
    %v197 = vpack.c.bf16 %v195, %v194
    %v198 = vld [vmem:[#allocation2 + $0x18] sm:$0xf]
    %v199 = vld [vmem:[#allocation2 + $0x1c] sm:$0xf]
    %v200 = vld [vmem:[#allocation2 + $0x20] sm:$0xf]
    %v201 = vld [vmem:[#allocation2 + $0x24] sm:$0xf]
    %v202 = vld [vmem:[#allocation2 + $0x28] sm:$0xf]
    %v203 = vld [vmem:[#allocation2 + $0x2c] sm:$0xf]
    %v204 = vld [vmem:[#allocation2 + $0x30] sm:$0xf]
    %v205 = vld [vmem:[#allocation2 + $0x34] sm:$0xf]
    %v206 = vunpack.c.l.bf16 %v198
    %v207 = vunpack.c.l.bf16 %v199
    %v208 = vunpack.c.l.bf16 %v200
    %v209 = vunpack.c.l.bf16 %v201
    %v210 = vunpack.c.l.bf16 %v202
    %v211 = vunpack.c.l.bf16 %v203
    %v212 = vunpack.c.l.bf16 %v204
    %v213 = vunpack.c.l.bf16 %v205
    %215 = vset.pattern.permute.xlu0 127
    %216 = vperm.xlu0 %215, %v206
    %v217 = vpop.permute.xlu0 %216
    %220 = vset.pattern.permute.xlu0 127
    %221 = vperm.xlu0 %220, %v207
    %v222 = vpop.permute.xlu0 %221
    %225 = vset.pattern.permute.xlu0 127
    %226 = vperm.xlu0 %225, %v208
    %v227 = vpop.permute.xlu0 %226
    %230 = vset.pattern.permute.xlu0 127
    %231 = vperm.xlu0 %230, %v209
    %v232 = vpop.permute.xlu0 %231
    %235 = vset.pattern.permute.xlu0 127
    %236 = vperm.xlu0 %235, %v210
    %v237 = vpop.permute.xlu0 %236
    %240 = vset.pattern.permute.xlu0 127
    %241 = vperm.xlu0 %240, %v211
    %v242 = vpop.permute.xlu0 %241
    %245 = vset.pattern.permute.xlu0 127
    %246 = vperm.xlu0 %245, %v212
    %v247 = vpop.permute.xlu0 %246
    %250 = vset.pattern.permute.xlu0 127
    %251 = vperm.xlu0 %250, %v213
    %v252 = vpop.permute.xlu0 %251
    %v262 = vunpack.c.l.b16 %v198
    %v263 = vunpack.c.l.b16 %v199
    %v264 = vunpack.c.l.b16 %v200
    %v265 = vunpack.c.l.b16 %v201
    %v266 = vunpack.c.l.b16 %v202
    %v267 = vunpack.c.l.b16 %v203
    %v268 = vunpack.c.l.b16 %v204
    %v269 = vunpack.c.l.b16 %v205
    %v270 = vpack.c.b16 %v263, %v262
    %v271 = vpack.c.b16 %v265, %v264
    %v272 = vpack.c.b16 %v267, %v266
    %v273 = vpack.c.b16 %v269, %v268
    %vm274 = vcmask 261120
    %v276 = vsel %vm274, %v270, 0
    %v279 = vsel %vm274, %v271, 0
    %v282 = vsel %vm274, %v272, 0
    %v285 = vsel %vm274, %v273, 0
    %287 = vmatprep.subr.bf16.mxu0 0
    %288 = vmatpush1.bf16.msra.mxu0 %v196
    %289 = vmatprep.subr.bf16.mxu0 0
    %290 = vmatpush1.bf16.msra.mxu0 %v197
    %291 = vmatprep.subr.bf16.mxu0 0
    %292 = vmatpush1.bf16.msra.mxu0 0
    %293 = vmatprep.subr.bf16.mxu0 0
    %294 = vmatpush1.bf16.msra.mxu0 0
    %295 = vmatprep.subr.bf16.mxu0 0
    %296 = vmatpush1.bf16.msra.mxu0 0
    %297 = vmatprep.subr.bf16.mxu0 0
    %298 = vmatpush1.bf16.msra.mxu0 0
    %299 = vmatprep.subr.bf16.mxu0 0
    %300 = vmatpush1.bf16.msra.mxu0 0
    %301 = vmatprep.subr.bf16.mxu0 0
    %302 = vmatpush1.bf16.msra.mxu0 0
    %303 = vmatprep.subr.bf16.mxu0 0
    %304 = vmatpush1.bf16.msra.mxu0 0
    %305 = vmatprep.subr.bf16.mxu0 0
    %306 = vmatpush1.bf16.msra.mxu0 0
    %307 = vmatprep.subr.bf16.mxu0 0
    %308 = vmatpush1.bf16.msra.mxu0 0
    %309 = vmatprep.subr.bf16.mxu0 0
    %310 = vmatpush1.bf16.msra.mxu0 0
    %311 = vmatprep.subr.bf16.mxu0 0
    %312 = vmatpush1.bf16.msra.mxu0 0
    %313 = vmatprep.subr.bf16.mxu0 0
    %314 = vmatpush1.bf16.msra.mxu0 0
    %315 = vmatprep.subr.bf16.mxu0 0
    %316 = vmatpush1.bf16.msra.mxu0 0
    %317 = vmatprep.subr.bf16.mxu0 0
    %318 = vmatpush1.bf16.msra.mxu0 0
    %319 = vmatprep.mubr.bf16.mxu0 0
    %320 = vmatmul.mubr.bf16.gmra.mrb[0].mxu0 %v276
    %v321 = vpop.f32.mrb[0].mxu0
    %v322 = vadd.f32 %v217, %v321
    %v323 = vpop.f32.mrb[0].mxu0
    %v324 = vpop.f32.mrb[0].mxu0
    %v325 = vadd.f32 %v222, %v324
    %v326 = vpop.f32.mrb[0].mxu0
    %327 = vmatprep.mubr.bf16.mxu0 0
    %328 = vmatmul.mubr.bf16.gmra.mrb[0].mxu0 %v279
    %v329 = vpop.f32.mrb[0].mxu0
    %v330 = vadd.f32 %v227, %v329
    %v331 = vpop.f32.mrb[0].mxu0
    %v332 = vpop.f32.mrb[0].mxu0
    %v333 = vadd.f32 %v232, %v332
    %v334 = vpop.f32.mrb[0].mxu0
    %335 = vmatprep.mubr.bf16.mxu0 0
    %336 = vmatmul.mubr.bf16.gmra.mrb[0].mxu0 %v282
    %v337 = vpop.f32.mrb[0].mxu0
    %v338 = vadd.f32 %v237, %v337
    %v339 = vpop.f32.mrb[0].mxu0
    %v340 = vpop.f32.mrb[0].mxu0
    %v341 = vadd.f32 %v242, %v340
    %v342 = vpop.f32.mrb[0].mxu0
    %343 = vmatprep.mubr.bf16.mxu0 0
    %344 = vmatmul.mubr.bf16.gmra.mrb[0].mxu0 %v285
    %v345 = vpop.f32.mrb[0].mxu0
    %v346 = vadd.f32 %v247, %v345
    %v347 = vpop.f32.mrb[0].mxu0
    %v348 = vpop.f32.mrb[0].mxu0
    %v349 = vadd.f32 %v252, %v348
    %v350 = vpop.f32.mrb[0].mxu0
    %351 = vdwg.mxu0
    %v352 = vmax.f32 %v322, 0.0
    %v353 = vmax.f32 %v325, 0.0
    %v354 = vmax.f32 %v330, 0.0
    %v355 = vmax.f32 %v333, 0.0
    %v356 = vmax.f32 %v338, 0.0
    %v357 = vmax.f32 %v341, 0.0
    %v358 = vmax.f32 %v346, 0.0
    %v359 = vmax.f32 %v349, 0.0
    %v360 = vpack.c.bf16 %v353, %v352
    %v361 = vpack.c.bf16 %v355, %v354
    %v362 = vpack.c.bf16 %v357, %v356
    %v363 = vpack.c.bf16 %v359, %v358
    %v364 = vld [vmem:[#allocation2 + $0x38] sm:$0xf]
    %v365 = vld [vmem:[#allocation2 + $0x3c] sm:$0xf]
    %v366 = vld [vmem:[#allocation2 + $0x40] sm:$0xf]
    %v367 = vld [vmem:[#allocation2 + $0x44] sm:$0xf]
    %v368 = vunpack.c.l.bf16 %v364
    %v369 = vunpack.c.l.bf16 %v365
    %v370 = vunpack.c.l.bf16 %v366
    %v371 = vunpack.c.l.bf16 %v367
    %373 = vset.pattern.permute.xlu0 127
    %374 = vperm.xlu0 %373, %v368
    %v375 = vpop.permute.xlu0 %374
    %378 = vset.pattern.permute.xlu0 127
    %379 = vperm.xlu0 %378, %v369
    %v380 = vpop.permute.xlu0 %379
    %383 = vset.pattern.permute.xlu0 127
    %384 = vperm.xlu0 %383, %v370
    %v385 = vpop.permute.xlu0 %384
    %388 = vset.pattern.permute.xlu0 127
    %389 = vperm.xlu0 %388, %v371
    %v390 = vpop.permute.xlu0 %389
    %v396 = vunpack.c.l.b16 %v364
    %v397 = vunpack.c.l.b16 %v365
    %v398 = vunpack.c.l.b16 %v366
    %v399 = vunpack.c.l.b16 %v367
    %v400 = vpack.c.b16 %v397, %v396
    %v401 = vpack.c.b16 %v399, %v398
    %vm402 = vcmask 523264
    %v404 = vsel %vm402, %v400, 0
    %v407 = vsel %vm402, %v401, 0
    %409 = vmatprep.subr.bf16.mxu0 0
    %410 = vmatpush1.bf16.msra.mxu0 %v360
    %411 = vmatprep.subr.bf16.mxu0 0
    %412 = vmatpush1.bf16.msra.mxu0 %v361
    %413 = vmatprep.subr.bf16.mxu0 0
    %414 = vmatpush1.bf16.msra.mxu0 %v362
    %415 = vmatprep.subr.bf16.mxu0 0
    %416 = vmatpush1.bf16.msra.mxu0 %v363
    %417 = vmatprep.subr.bf16.mxu0 0
    %418 = vmatpush1.bf16.msra.mxu0 0
    %419 = vmatprep.subr.bf16.mxu0 0
    %420 = vmatpush1.bf16.msra.mxu0 0
    %421 = vmatprep.subr.bf16.mxu0 0
    %422 = vmatpush1.bf16.msra.mxu0 0
    %423 = vmatprep.subr.bf16.mxu0 0
    %424 = vmatpush1.bf16.msra.mxu0 0
    %425 = vmatprep.subr.bf16.mxu0 0
    %426 = vmatpush1.bf16.msra.mxu0 0
    %427 = vmatprep.subr.bf16.mxu0 0
    %428 = vmatpush1.bf16.msra.mxu0 0
    %429 = vmatprep.subr.bf16.mxu0 0
    %430 = vmatpush1.bf16.msra.mxu0 0
    %431 = vmatprep.subr.bf16.mxu0 0
    %432 = vmatpush1.bf16.msra.mxu0 0
    %433 = vmatprep.subr.bf16.mxu0 0
    %434 = vmatpush1.bf16.msra.mxu0 0
    %435 = vmatprep.subr.bf16.mxu0 0
    %436 = vmatpush1.bf16.msra.mxu0 0
    %437 = vmatprep.subr.bf16.mxu0 0
    %438 = vmatpush1.bf16.msra.mxu0 0
    %439 = vmatprep.subr.bf16.mxu0 0
    %440 = vmatpush1.bf16.msra.mxu0 0
    %441 = vmatprep.mubr.bf16.mxu0 0
    %442 = vmatmul.mubr.bf16.gmra.mrb[0].mxu0 %v404
    %v443 = vpop.f32.mrb[0].mxu0
    %v444 = vadd.f32 %v375, %v443
    %v445 = vpop.f32.mrb[0].mxu0
    %v446 = vpop.f32.mrb[0].mxu0
    %v447 = vadd.f32 %v380, %v446
    %v448 = vpop.f32.mrb[0].mxu0
    %449 = vmatprep.mubr.bf16.mxu0 0
    %450 = vmatmul.mubr.bf16.gmra.mrb[0].mxu0 %v407
    %v451 = vpop.f32.mrb[0].mxu0
    %v452 = vadd.f32 %v385, %v451
    %v453 = vpop.f32.mrb[0].mxu0
    %v454 = vpop.f32.mrb[0].mxu0
    %v455 = vadd.f32 %v390, %v454
    %v456 = vpop.f32.mrb[0].mxu0
    %457 = vdwg.mxu0
    %v458 = vmax.f32 %v444, 0.0
    %v459 = vmax.f32 %v447, 0.0
    %v460 = vmax.f32 %v452, 0.0
    %v461 = vmax.f32 %v455, 0.0
    %v462 = vpack.c.bf16 %v459, %v458
    %v463 = vpack.c.bf16 %v461, %v460
    %v464 = vld [vmem:[#allocation2 + $0x48] sm:$0xf]
    %v465 = vld [vmem:[#allocation2 + $0x4c] sm:$0xf]
    %v466 = vunpack.c.l.bf16 %v464
    %v467 = vunpack.c.l.bf16 %v465
    %469 = vset.pattern.permute.xlu0 127
    %470 = vperm.xlu0 %469, %v466
    %v471 = vpop.permute.xlu0 %470
    %474 = vset.pattern.permute.xlu0 127
    %475 = vperm.xlu0 %474, %v467
    %v476 = vpop.permute.xlu0 %475
    %v480 = vunpack.c.l.b16 %v464
    %v481 = vunpack.c.l.b16 %v465
    %v482 = vpack.c.b16 %v481, %v480
    %v484 = vsel %vm274, %v482, 0
    %486 = vmatprep.subr.bf16.mxu0 0
    %487 = vmatpush1.bf16.msra.mxu0 %v462
    %488 = vmatprep.subr.bf16.mxu0 0
    %489 = vmatpush1.bf16.msra.mxu0 %v463
    %490 = vmatprep.subr.bf16.mxu0 0
    %491 = vmatpush1.bf16.msra.mxu0 0
    %492 = vmatprep.subr.bf16.mxu0 0
    %493 = vmatpush1.bf16.msra.mxu0 0
    %494 = vmatprep.subr.bf16.mxu0 0
    %495 = vmatpush1.bf16.msra.mxu0 0
    %496 = vmatprep.subr.bf16.mxu0 0
    %497 = vmatpush1.bf16.msra.mxu0 0
    %498 = vmatprep.subr.bf16.mxu0 0
    %499 = vmatpush1.bf16.msra.mxu0 0
    %500 = vmatprep.subr.bf16.mxu0 0
    %501 = vmatpush1.bf16.msra.mxu0 0
    %502 = vmatprep.subr.bf16.mxu0 0
    %503 = vmatpush1.bf16.msra.mxu0 0
    %504 = vmatprep.subr.bf16.mxu0 0
    %505 = vmatpush1.bf16.msra.mxu0 0
    %506 = vmatprep.subr.bf16.mxu0 0
    %507 = vmatpush1.bf16.msra.mxu0 0
    %508 = vmatprep.subr.bf16.mxu0 0
    %509 = vmatpush1.bf16.msra.mxu0 0
    %510 = vmatprep.subr.bf16.mxu0 0
    %511 = vmatpush1.bf16.msra.mxu0 0
    %512 = vmatprep.subr.bf16.mxu0 0
    %513 = vmatpush1.bf16.msra.mxu0 0
    %514 = vmatprep.subr.bf16.mxu0 0
    %515 = vmatpush1.bf16.msra.mxu0 0
    %516 = vmatprep.subr.bf16.mxu0 0
    %517 = vmatpush1.bf16.msra.mxu0 0
    %518 = vmatprep.mubr.bf16.mxu0 0
    %519 = vmatmul.mubr.bf16.gmra.mrb[0].mxu0 %v484
    %v520 = vpop.f32.mrb[0].mxu0
    %v521 = vadd.f32 %v471, %v520
    %v522 = vpop.f32.mrb[0].mxu0
    %v523 = vpop.f32.mrb[0].mxu0
    %v524 = vadd.f32 %v476, %v523
    %v525 = vpop.f32.mrb[0].mxu0
    %526 = vdwg.mxu0
    %v527 = vmax.f32 %v521, 0.0
    %v528 = vmax.f32 %v524, 0.0
    %v529 = vpack.c.bf16 %v528, %v527
    %v530 = vld [vmem:[#allocation2 + $0x50] sm:$0x1]
    %v531 = vunpack.c.l.bf16 %v530
    %533 = vset.pattern.permute.xlu0 127
    %534 = vperm.xlu0 %533, %v531
    %v535 = vpop.permute.xlu0 %534
    %v538 = vsel %vm136, %v530, 0
    %540 = vmatprep.subr.bf16.mxu0 0
    %541 = vmatpush1.bf16.msra.mxu0 %v529
    %542 = vmatprep.subr.bf16.mxu0 0
    %543 = vmatpush1.bf16.msra.mxu0 0
    %544 = vmatprep.subr.bf16.mxu0 0
    %545 = vmatpush1.bf16.msra.mxu0 0
    %546 = vmatprep.subr.bf16.mxu0 0
    %547 = vmatpush1.bf16.msra.mxu0 0
    %548 = vmatprep.subr.bf16.mxu0 0
    %549 = vmatpush1.bf16.msra.mxu0 0
    %550 = vmatprep.subr.bf16.mxu0 0
    %551 = vmatpush1.bf16.msra.mxu0 0
    %552 = vmatprep.subr.bf16.mxu0 0
    %553 = vmatpush1.bf16.msra.mxu0 0
    %554 = vmatprep.subr.bf16.mxu0 0
    %555 = vmatpush1.bf16.msra.mxu0 0
    %556 = vmatprep.subr.bf16.mxu0 0
    %557 = vmatpush1.bf16.msra.mxu0 0
    %558 = vmatprep.subr.bf16.mxu0 0
    %559 = vmatpush1.bf16.msra.mxu0 0
    %560 = vmatprep.subr.bf16.mxu0 0
    %561 = vmatpush1.bf16.msra.mxu0 0
    %562 = vmatprep.subr.bf16.mxu0 0
    %563 = vmatpush1.bf16.msra.mxu0 0
    %564 = vmatprep.subr.bf16.mxu0 0
    %565 = vmatpush1.bf16.msra.mxu0 0
    %566 = vmatprep.subr.bf16.mxu0 0
    %567 = vmatpush1.bf16.msra.mxu0 0
    %568 = vmatprep.subr.bf16.mxu0 0
    %569 = vmatpush1.bf16.msra.mxu0 0
    %570 = vmatprep.subr.bf16.mxu0 0
    %571 = vmatpush1.bf16.msra.mxu0 0
    %572 = vmatprep.mubr.bf16.mxu0 0
    %573 = vmatmul.mubr.bf16.gmra.mrb[0].mxu0 %v538
    %v574 = vpop.f32.mrb[0].mxu0
    %v575 = vadd.f32 %v535, %v574
    %v576 = vpop.f32.mrb[0].mxu0
    %v577 = vpop.f32.mrb[0].mxu0
    %v578 = vpop.f32.mrb[0].mxu0
    %579 = vdwg.mxu0
    %v580 = vxor.u32 %v575, 2147483648
    %v581 = vmul.f32 %v580, 1.442695
    %v582 = vpow.pop %v581
    %v583 = vadd.f32 %v582, 1.0
    %v584 = vrcp.pop %v583
    %v585 = vmul.f32 1.0, %v584
    %586 = vst [vmem:[%s2] sm:$0x1] %v585
    // Predicated region
    $region14: #{mlp_forward.1} parent=1 // pred_check
      _
    $region15: #{mlp_forward.1} parent=1 // pred_check_branch
      %588 = sbr.rel (0) target = $region17
    $region16: #{mlp_forward.1} parent=1 // pred_region
      _
    $region17: #{mlp_forward.1} parent=1 // pred_fallthru
      _
    // Predicated region
    $region18: #{mlp_forward.1} parent=1 // pred_check
      _
    $region19: #{mlp_forward.1} parent=1 // pred_check_branch
      %590 = sbr.rel (0) target = $region21
    $region20: #{mlp_forward.1} parent=1 // pred_region
      _
    $region21: #{mlp_forward.1} parent=1 // pred_fallthru
      _
    %591 = vsyncpa [#allocation3], 1

</llo_original>
